<compile_context>
chip_gen: v5e
topology: v5e:2x2
jax: 0.10.0
libtpu: 0.0.40
codegen_flags: <defaults>
</compile_context>

<pallas_src>
import functools

import jax
import jax.numpy as jnp
from jax.experimental import pallas as pl
from jax.experimental.pallas import tpu as pltpu


def _round_up(x, m):
    return ((x + m - 1) // m) * m


def _layout(input_dim, hidden_dim, output_dim, layer_num):
    """Static row/column layout of the packed parameter buffer."""
    align = 16    # sublane tile for bf16 (also a multiple of the f32 tile of 8)
    P = _round_up(max(2 * hidden_dim, output_dim + 1), 128)

    sections = []  # (row_start, contract_rows) for each weight matmul
    r = 0
    # mlp_head layer 0: contracts over input_dim
    sections.append((r, input_dim))
    r += _round_up(input_dim, align)
    # mlp_head layers 1..L-1, fused head layer 1, fused head layer 2:
    # these all contract over the padded activation width P
    for _ in range(layer_num - 1 + 2):
        sections.append((r, P))
        r += P
    bias_start = r
    r += _round_up(layer_num + 2, align)
    return {
        "P": P,
        "sections": tuple(sections),
        "bias_start": bias_start,
        "total_rows": r,
    }


def pack_params(params, input_dim, hidden_dim, output_dim, layer_num,
                dtype=jnp.float32):
    """Packs the flat param list into one (R, P) zero-padded buffer.

    params = [w0, b0, ..., w_{L-1}, b_{L-1},
              adv_w0, adv_b0, adv_w1, adv_b1,
              v_w0,   v_b0,   v_w1,   v_b1]
    with weights shaped (in, out) and biases shaped (1, out).
    """
    H = hidden_dim
    meta = _layout(input_dim, H, output_dim, layer_num)
    P, R = meta["P"], meta["total_rows"]
    sections, bias_start = meta["sections"], meta["bias_start"]

    buf = jnp.zeros((R, P), jnp.float32)

    # mlp_head trunk
    for i in range(layer_num):
        w, b = params[2 * i], params[2 * i + 1]
        s, _ = sections[i]
        buf = buf.at[s:s + w.shape[0], :H].set(w)
        buf = buf.at[bias_start + i, :H].set(b[0])

    adv_w0, adv_b0, adv_w1, adv_b1 = params[2 * layer_num: 2 * layer_num + 4]
    v_w0, v_b0, v_w1, v_b1 = params[2 * layer_num + 4: 2 * layer_num + 8]

    # fused head layer 1: columns [0:H] -> v hidden, [H:2H] -> adv hidden
    s, _ = sections[layer_num]
    buf = buf.at[s:s + H, 0:H].set(v_w0)
    buf = buf.at[s:s + H, H:2 * H].set(adv_w0)
    buf = buf.at[bias_start + layer_num, 0:H].set(v_b0[0])
    buf = buf.at[bias_start + layer_num, H:2 * H].set(adv_b0[0])

    # fused head layer 2: columns [0:out] -> adv, column [out] -> v
    s, _ = sections[layer_num + 1]
    buf = buf.at[s + H:s + 2 * H, 0:output_dim].set(adv_w1)
    buf = buf.at[s:s + H, output_dim:output_dim + 1].set(v_w1)
    buf = buf.at[bias_start + layer_num + 1, 0:output_dim].set(adv_b1[0])
    buf = buf.at[bias_start + layer_num + 1, output_dim].set(v_b1[0, 0])

    return buf.astype(dtype)


def _make_kernel(layer_num, output_dim, sections, bias_start):
    """Builds a kernel body specialized for the static layout."""

    def kernel(obs_ref, p_ref, q_ref):
        pdt = p_ref.dtype

        def matmul(a, row_start, contract_rows):
            w = p_ref[pl.ds(row_start, contract_rows), :]
            return jnp.dot(a.astype(pdt), w,
                           preferred_element_type=jnp.float32)

        def bias(j):
            return p_ref[pl.ds(bias_start + j, 1), :].astype(jnp.float32)

        x = obs_ref[...]                                    # (Bt, input_dim)

        # mlp_head: layer_num x (Linear + ReLU); activations padded to P lanes
        for i in range(layer_num):
            s, n = sections[i]
            x = jnp.maximum(matmul(x, s, n) + bias(i), 0.0)

        # fused v/adv head layer 1: one matmul + ReLU -> [h_v | h_a | 0]
        s, n = sections[layer_num]
        h = jnp.maximum(matmul(x, s, n) + bias(layer_num), 0.0)

        # fused v/adv head layer 2: one matmul -> [adv | v | 0]
        s, n = sections[layer_num + 1]
        y = matmul(h, s, n) + bias(layer_num + 1)

        # dueling combine: q = v + adv - mean(adv)
        lane = jax.lax.broadcasted_iota(jnp.int32, y.shape, 1)
        adv_sum = jnp.sum(jnp.where(lane < output_dim, y, 0.0),
                          axis=-1, keepdims=True)
        adv_mean = adv_sum * (1.0 / output_dim)
        v = jnp.sum(jnp.where(lane == output_dim, y, 0.0),
                    axis=-1, keepdims=True)
        # Lanes >= output_dim carry don't-care values; wrapper slices them off.
        q_ref[...] = (y + v - adv_mean).astype(q_ref.dtype)

    return kernel


def dueling_critic_forward(obs, packed, layer_num, input_dim, mlp_hidden_dim,
                           output_dim):
    """Runs the DuelingCritic forward pass in a single Pallas call."""
    B = obs.shape[0]
    H = mlp_hidden_dim
    meta = _layout(input_dim, H, output_dim, layer_num)
    P = meta["P"]

    # Batch grid: keep small batches in one program; split large 128-divisible
    # batches so v7x's second TensorCore is used (params stay VMEM-resident
    # because their index_map is constant).
    if B >= 256 and B % 128 == 0:
        bt = 128
    else:
        bt = B
    grid = (B // bt,)

    kernel = _make_kernel(layer_num, output_dim, meta["sections"],
                          meta["bias_start"])

    flops = 2 * B * (input_dim * H + (layer_num - 1) * H * H
                     + 2 * H * H + H * (output_dim + 1))
    bytes_accessed = (obs.size * obs.dtype.itemsize
                      + packed.size * packed.dtype.itemsize
                      + B * P * 4)

    q_pad = pl.pallas_call(
        kernel,
        out_shape=jax.ShapeDtypeStruct((B, P), jnp.float32),
        grid=grid,
        in_specs=[
            pl.BlockSpec((bt, input_dim), lambda i: (i, 0)),
            pl.BlockSpec(packed.shape, lambda i: (0, 0)),   # single param DMA
        ],
        out_specs=pl.BlockSpec((bt, P), lambda i: (i, 0)),
        compiler_params=pltpu.CompilerParams(
            dimension_semantics=("parallel",)),
        cost_estimate=pl.CostEstimate(flops=flops, transcendentals=0,
                                      bytes_accessed=bytes_accessed),
    )(obs, packed)
    return q_pad[:, :output_dim]


def init_params(key, input_dim, mlp_hidden_dim, output_dim, layer_num):
    """PyTorch nn.Linear-style init (uniform +-1/sqrt(fan_in)).

    Returns weights already transposed to (in, out); biases as (1, out)."""
    params = []

    def linear(key, fan_in, fan_out):
        kw, kb = jax.random.split(key)
        bound = 1.0 / jnp.sqrt(jnp.float32(fan_in))
        w = jax.random.uniform(kw, (fan_in, fan_out), jnp.float32, -bound, bound)
        b = jax.random.uniform(kb, (1, fan_out), jnp.float32, -bound, bound)
        return w, b

    keys = jax.random.split(key, layer_num + 4)
    k_idx = 0
    for idx in range(layer_num):
        i_dim = input_dim if idx == 0 else mlp_hidden_dim
        w, b = linear(keys[k_idx], i_dim, mlp_hidden_dim)
        k_idx += 1
        params += [w, b]
    # adv_head
    w, b = linear(keys[k_idx], mlp_hidden_dim, mlp_hidden_dim)
    k_idx += 1
    params += [w, b]
    w, b = linear(keys[k_idx], mlp_hidden_dim, output_dim)
    k_idx += 1
    params += [w, b]
    # v_head
    w, b = linear(keys[k_idx], mlp_hidden_dim, mlp_hidden_dim)
    k_idx += 1
    params += [w, b]
    w, b = linear(keys[k_idx], mlp_hidden_dim, 1)
    params += [w, b]
    return params


def reference_forward(obs, params, layer_num):
    """Pure-JAX reference (mirrors the PyTorch forward)."""
    idx = 0
    x = obs
    for _ in range(layer_num):
        w, b = params[idx], params[idx + 1]
        idx += 2
        x = jnp.maximum(x @ w + b, 0.0)
    adv_w0, adv_b0, adv_w1, adv_b1 = params[idx: idx + 4]
    v_w0, v_b0, v_w1, v_b1 = params[idx + 4: idx + 8]
    v = jnp.maximum(x @ v_w0 + v_b0, 0.0) @ v_w1 + v_b1
    adv = jnp.maximum(x @ adv_w0 + adv_b0, 0.0) @ adv_w1 + adv_b1
    return v + adv - jnp.mean(adv, axis=-1, keepdims=True)


if __name__ == "__main__":
    batch = 8
    input_dim = 16
    mlp_hidden_dim = 32
    output_dim = 4
    layer_num = 2

    key = jax.random.PRNGKey(0)
    k_obs, k_params = jax.random.split(key)

    obs = jax.random.normal(k_obs, (batch, input_dim), jnp.float32)
    params = init_params(k_params, input_dim, mlp_hidden_dim, output_dim,
                         layer_num)

    fwd = jax.jit(functools.partial(
        dueling_critic_forward, layer_num=layer_num, input_dim=input_dim,
        mlp_hidden_dim=mlp_hidden_dim, output_dim=output_dim))

    q_ref = reference_forward(obs, params, layer_num)

    # f32 params: should match the pure-JAX reference tightly.
    packed_f32 = pack_params(params, input_dim, mlp_hidden_dim, output_dim,
                             layer_num, dtype=jnp.float32)
    q = fwd(obs, packed_f32)
    jax.block_until_ready(q)
    assert q.shape == (batch, output_dim)
    assert jnp.allclose(q, q_ref, atol=1e-5, rtol=1e-5), "f32 mismatch vs reference"

    # bf16-stored params (fast MXU input path on v6e/v7x, half the DMA bytes);
    # accumulation stays f32 via preferred_element_type.
    packed_bf16 = pack_params(params, input_dim, mlp_hidden_dim, output_dim,
                              layer_num, dtype=jnp.bfloat16)
    q_bf16 = fwd(obs, packed_bf16)
    jax.block_until_ready(q_bf16)
    assert jnp.allclose(q_bf16, q_ref, atol=1e-1, rtol=1e-1), "bf16 mismatch vs reference"

    print("KERNEL_OK")
</pallas_src>

<mosaic_0001>
module attributes {stable_mosaic.version = 11 : i64} {
  func.func @kernel(%arg0: i32, %arg1: memref<8x16xf32, #tpu.memory_space<vmem>>, %arg2: memref<416x128xf32, #tpu.memory_space<vmem>>, %arg3: memref<8x128xf32, #tpu.memory_space<vmem>>) attributes {dimension_semantics = [#tpu.dimension_semantics<parallel>], iteration_bounds = array<i64: 1>, scalar_prefetch = 0 : i64, scratch_operands = 0 : i64, tpu.core_type = #tpu.core_type<tc>, window_params = [{transform_indices = @transform_0, window_bounds = array<i64: 8, 16>}, {pipeline_mode = #tpu.pipeline_mode<synchronous>, transform_indices = @transform_1, window_bounds = array<i64: 416, 128>}, {transform_indices = @transform_2, window_bounds = array<i64: 8, 128>}]} {
    %c0 = arith.constant 0 : index
    %c0_0 = arith.constant 0 : index
    %0 = vector.load %arg1[%c0, %c0_0] : memref<8x16xf32, #tpu.memory_space<vmem>>, vector<8x16xf32>
    %c0_1 = arith.constant 0 : index
    %c0_2 = arith.constant 0 : index
    %1 = vector.load %arg2[%c0_1, %c0_2] : memref<416x128xf32, #tpu.memory_space<vmem>>, vector<16x128xf32>
    %cst = arith.constant dense<0.000000e+00> : vector<8x128xf32>
    %2 = tpu.matmul %0, %1, %cst {dimension_numbers = #tpu.dot_dimension_numbers<[1], [0], [0], [1], [0, 0, 1, 1], [], []>} : vector<8x16xf32>, vector<16x128xf32>, vector<8x128xf32> -> vector<8x128xf32>
    %c400 = arith.constant 400 : index
    %c0_3 = arith.constant 0 : index
    %3 = vector.load %arg2[%c400, %c0_3] : memref<416x128xf32, #tpu.memory_space<vmem>>, vector<1x128xf32>
    %4 = vector.broadcast %3 : vector<1x128xf32> to vector<8x128xf32>
    %5 = arith.addf %2, %4 : vector<8x128xf32>
    %cst_4 = arith.constant 0.000000e+00 : f32
    %6 = vector.broadcast %cst_4 : f32 to vector<8x128xf32>
    %7 = arith.maximumf %5, %6 : vector<8x128xf32>
    %c16 = arith.constant 16 : index
    %c0_5 = arith.constant 0 : index
    %8 = vector.load %arg2[%c16, %c0_5] : memref<416x128xf32, #tpu.memory_space<vmem>>, vector<128x128xf32>
    %cst_6 = arith.constant dense<0.000000e+00> : vector<8x128xf32>
    %9 = tpu.matmul %7, %8, %cst_6 {dimension_numbers = #tpu.dot_dimension_numbers<[1], [0], [0], [1], [0, 0, 1, 1], [], []>} : vector<8x128xf32>, vector<128x128xf32>, vector<8x128xf32> -> vector<8x128xf32>
    %c401 = arith.constant 401 : index
    %c0_7 = arith.constant 0 : index
    %10 = vector.load %arg2[%c401, %c0_7] : memref<416x128xf32, #tpu.memory_space<vmem>>, vector<1x128xf32>
    %11 = vector.broadcast %10 : vector<1x128xf32> to vector<8x128xf32>
    %12 = arith.addf %9, %11 : vector<8x128xf32>
    %cst_8 = arith.constant 0.000000e+00 : f32
    %13 = vector.broadcast %cst_8 : f32 to vector<8x128xf32>
    %14 = arith.maximumf %12, %13 : vector<8x128xf32>
    %c144 = arith.constant 144 : index
    %c0_9 = arith.constant 0 : index
    %15 = vector.load %arg2[%c144, %c0_9] : memref<416x128xf32, #tpu.memory_space<vmem>>, vector<128x128xf32>
    %cst_10 = arith.constant dense<0.000000e+00> : vector<8x128xf32>
    %16 = tpu.matmul %14, %15, %cst_10 {dimension_numbers = #tpu.dot_dimension_numbers<[1], [0], [0], [1], [0, 0, 1, 1], [], []>} : vector<8x128xf32>, vector<128x128xf32>, vector<8x128xf32> -> vector<8x128xf32>
    %c402 = arith.constant 402 : index
    %c0_11 = arith.constant 0 : index
    %17 = vector.load %arg2[%c402, %c0_11] : memref<416x128xf32, #tpu.memory_space<vmem>>, vector<1x128xf32>
    %18 = vector.broadcast %17 : vector<1x128xf32> to vector<8x128xf32>
    %19 = arith.addf %16, %18 : vector<8x128xf32>
    %cst_12 = arith.constant 0.000000e+00 : f32
    %20 = vector.broadcast %cst_12 : f32 to vector<8x128xf32>
    %21 = arith.maximumf %19, %20 : vector<8x128xf32>
    %c272 = arith.constant 272 : index
    %c0_13 = arith.constant 0 : index
    %22 = vector.load %arg2[%c272, %c0_13] : memref<416x128xf32, #tpu.memory_space<vmem>>, vector<128x128xf32>
    %cst_14 = arith.constant dense<0.000000e+00> : vector<8x128xf32>
    %23 = tpu.matmul %21, %22, %cst_14 {dimension_numbers = #tpu.dot_dimension_numbers<[1], [0], [0], [1], [0, 0, 1, 1], [], []>} : vector<8x128xf32>, vector<128x128xf32>, vector<8x128xf32> -> vector<8x128xf32>
    %c403 = arith.constant 403 : index
    %c0_15 = arith.constant 0 : index
    %24 = vector.load %arg2[%c403, %c0_15] : memref<416x128xf32, #tpu.memory_space<vmem>>, vector<1x128xf32>
    %25 = vector.broadcast %24 : vector<1x128xf32> to vector<8x128xf32>
    %26 = arith.addf %23, %25 : vector<8x128xf32>
    %27 = tpu.iota {dimensions = array<i32: 1>} : vector<8x128xi32>
    %c4_i32 = arith.constant 4 : i32
    %28 = vector.broadcast %c4_i32 : i32 to vector<8x128xi32>
    %29 = arith.cmpi slt, %27, %28 : vector<8x128xi32>
    %cst_16 = arith.constant 0.000000e+00 : f32
    %30 = vector.broadcast %cst_16 : f32 to vector<8x128xf32>
    %31 = arith.select %29, %26, %30 : vector<8x128xi1>, vector<8x128xf32>
    %cst_17 = arith.constant dense<0.000000e+00> : vector<8xf32>
    %32 = vector.multi_reduction <add>, %31, %cst_17 [1] : vector<8x128xf32> to vector<8xf32>
    %33 = vector.shape_cast %32 : vector<8xf32> to vector<8x1xf32>
    %cst_18 = arith.constant 2.500000e-01 : f32
    %34 = vector.broadcast %cst_18 : f32 to vector<8x1xf32>
    %35 = arith.mulf %33, %34 : vector<8x1xf32>
    %c4_i32_19 = arith.constant 4 : i32
    %36 = vector.broadcast %c4_i32_19 : i32 to vector<8x128xi32>
    %37 = arith.cmpi eq, %27, %36 : vector<8x128xi32>
    %cst_20 = arith.constant 0.000000e+00 : f32
    %38 = vector.broadcast %cst_20 : f32 to vector<8x128xf32>
    %39 = arith.select %37, %26, %38 : vector<8x128xi1>, vector<8x128xf32>
    %cst_21 = arith.constant dense<0.000000e+00> : vector<8xf32>
    %40 = vector.multi_reduction <add>, %39, %cst_21 [1] : vector<8x128xf32> to vector<8xf32>
    %41 = vector.shape_cast %40 : vector<8xf32> to vector<8x1xf32>
    %42 = vector.broadcast %41 : vector<8x1xf32> to vector<8x128xf32>
    %43 = arith.addf %26, %42 : vector<8x128xf32>
    %44 = vector.broadcast %35 : vector<8x1xf32> to vector<8x128xf32>
    %45 = arith.subf %43, %44 : vector<8x128xf32>
    %c0_22 = arith.constant 0 : index
    %c0_23 = arith.constant 0 : index
    %46 = vector.load %arg3[%c0_22, %c0_23] : memref<8x128xf32, #tpu.memory_space<vmem>>, vector<8x128xf32>
    tpu.vector_store %arg3[%c0_22, %c0_23], %45 {strides = array<i32>} : memref<8x128xf32, #tpu.memory_space<vmem>>, vector<8x128xf32>,
    return
  }
  func.func @transform_0(%arg0: i32) -> (i32, i32) {
    %c0_i32 = arith.constant 0 : i32
    %c0_i32_0 = arith.constant 0 : i32
    return %arg0, %c0_i32 : i32, i32
  }
  func.func @transform_1(%arg0: i32) -> (i32, i32) {
    %c0_i32 = arith.constant 0 : i32
    %c0_i32_0 = arith.constant 0 : i32
    %c0_i32_1 = arith.constant 0 : i32
    return %c0_i32, %c0_i32_0 : i32, i32
  }
  func.func @transform_2(%arg0: i32) -> (i32, i32) {
    %c0_i32 = arith.constant 0 : i32
    %c0_i32_0 = arith.constant 0 : i32
    return %arg0, %c0_i32 : i32, i32
  }
}

</mosaic_0001>

<llo_original>
// kernel: dueling_critic_forward.1
$region0: #{dueling_critic_forward.1}
  #allocation0 [shape = 'u32[]', space=smem, size = 0x4, offset = 0x4, fixed_abs, tag = 'smem constant byte address 0x4 - core index']
  #allocation1 [shape = 'u32[72,128]{1,0:T(1,128)}', space=vmem, size = 0x9000, scoped, tag = 'internal scratch']
  %s0 = inlined_call_operand.hbm [shape: f32[8,16], index: 0, kind: input, shape index: {}]
  %s1 = inlined_call_operand.hbm [shape: f32[416,128], index: 1, kind: input, shape index: {}]
  %s2 = inlined_call_operand.vmem [shape: f32[8,128], index: 2, kind: output, shape index: {}]
  %s3 = sld [smem:[#allocation0]]
  $region26: #{dueling_critic_forward.1} parent=0
    _
  %s5 = ssub.s32 1, %s3
  %s6 = scalar_select 0, %s5, %s3
  $region1: #{dueling_critic_forward.1} parent=0
    #allocation2 [shape = 'u8[4096]{0}', space=vmem, size = 0x1000, scoped, tag = 'input window, operand 0, single buffered']
    #allocation3 [shape = 's32[1]{0}', space=sflag, size = 0x4, scoped, tag = 'scoped memory for dueling_critic_forward.1']
    #allocation4 [shape = 'u8[212992]{0}', space=vmem, size = 0x34000, scoped, tag = 'input window, operand 1, single buffered']
    #allocation5 [shape = 's32[1]{0}', space=sflag, size = 0x4, scoped, tag = 'scoped memory for dueling_critic_forward.1']
    %7 = vsyncpa [#allocation3], 0
    %8 = vsyncpa [#allocation5], 0
    // Predicated region
    $region2: #{dueling_critic_forward.1} parent=1 // pred_check
      _
    $region3: #{dueling_critic_forward.1} parent=1 // pred_check_branch
      %10 = sbr.rel (0) target = $region5
    $region4: #{dueling_critic_forward.1} parent=1 // pred_region
      %12 = vsyncadd [#allocation3], 0
      %s14 = sshll.u32 %s0, 4
      %s15 = int_to_ptr.hbm [resolvable:$true] %s14
      %s16 = sshll.u32 [#allocation2], 4
      %s17 = int_to_ptr.vmem [resolvable:$true] %s16
      %19 = dma.hbm_to_vmem [thread:$0]  %s15, 128, %s17, [#allocation3]
    $region5: #{dueling_critic_forward.1} parent=1 // pred_fallthru
      _
    // Predicated region
    $region6: #{dueling_critic_forward.1} parent=1 // pred_check
      _
    $region7: #{dueling_critic_forward.1} parent=1 // pred_check_branch
      %21 = sbr.rel (0) target = $region9
    $region8: #{dueling_critic_forward.1} parent=1 // pred_region
      %23 = vsyncadd [#allocation5], 0
      %s24 = sshll.u32 %s1, 4
      %s25 = int_to_ptr.hbm [resolvable:$true] %s24
      %s26 = sshll.u32 [#allocation4], 4
      %s27 = int_to_ptr.vmem [resolvable:$true] %s26
      %32 = dma.hbm_to_vmem [thread:$0]  %s25, 6656, %s27, [#allocation5], 128, 128, 8
    $region9: #{dueling_critic_forward.1} parent=1 // pred_fallthru
      _
    // Predicated region
    $region10: #{dueling_critic_forward.1} parent=1 // pred_check
      _
    $region11: #{dueling_critic_forward.1} parent=1 // pred_check_branch
      %34 = sbr.rel (0) target = $region13
    $region12: #{dueling_critic_forward.1} parent=1 // pred_region
      %36 = dma.done [#allocation3], 128
    $region13: #{dueling_critic_forward.1} parent=1 // pred_fallthru
      _
    // Predicated region
    $region14: #{dueling_critic_forward.1} parent=1 // pred_check
      _
    $region15: #{dueling_critic_forward.1} parent=1 // pred_check_branch
      %38 = sbr.rel (0) target = $region17
    $region16: #{dueling_critic_forward.1} parent=1 // pred_region
      %40 = dma.done [#allocation5], 6656
    $region17: #{dueling_critic_forward.1} parent=1 // pred_fallthru
      _
    %v41 = vld [vmem:[#allocation2] sm:$0xff]
    %v42 = vld [vmem:[#allocation4] sm:$0xff]
    %v43 = vld [vmem:[#allocation4 + $0x8] sm:$0xff]
    %v44 = vld [vmem:[#allocation4 + $0x190] sm:$0x1]
    %v45 = vperm.slane %v44, 0
    %vm46 = vcmask 130048
    %v48 = vsel %vm46, %v41, 0
    %50 = vmatpush.msra.mxu0 0.0
    %51 = vmatpush.msra.mxu0 0.0
    %52 = vmatpush.msra.mxu0 0.0
    %53 = vmatpush.msra.mxu0 0.0
    %54 = vmatpush.msra.mxu0 0.0
    %55 = vmatpush.msra.mxu0 0.0
    %56 = vmatpush.msra.mxu0 0.0
    %57 = vmatpush.msra.mxu0 0.0
    %58 = vmatpush.msra.mxu0 0.0
    %59 = vmatpush.msra.mxu0 0.0
    %60 = vmatpush.msra.mxu0 0.0
    %61 = vmatpush.msra.mxu0 0.0
    %62 = vmatpush.msra.mxu0 0.0
    %63 = vmatpush.msra.mxu0 0.0
    %64 = vmatpush.msra.mxu0 %v43
    %65 = vmatpush.msra.mxu0 %v42
    %66 = vmatmul.f32.gmra.mxu0 %v48
    %v67 = vpop.f32.mrf.mxu0
    %v68 = vadd.f32 %v45, %v67
    %69 = vdwg.mxu0
    %v70 = vmax.f32 %v68, 0.0
    %v71 = vld [vmem:[#allocation4 + $0x10] sm:$0xff]
    %v72 = vld [vmem:[#allocation4 + $0x18] sm:$0xff]
    %v73 = vld [vmem:[#allocation4 + $0x20] sm:$0xff]
    %v74 = vld [vmem:[#allocation4 + $0x28] sm:$0xff]
    %v75 = vld [vmem:[#allocation4 + $0x30] sm:$0xff]
    %v76 = vld [vmem:[#allocation4 + $0x38] sm:$0xff]
    %v77 = vld [vmem:[#allocation4 + $0x40] sm:$0xff]
    %v78 = vld [vmem:[#allocation4 + $0x48] sm:$0xff]
    %v79 = vld [vmem:[#allocation4 + $0x50] sm:$0xff]
    %v80 = vld [vmem:[#allocation4 + $0x58] sm:$0xff]
    %v81 = vld [vmem:[#allocation4 + $0x60] sm:$0xff]
    %v82 = vld [vmem:[#allocation4 + $0x68] sm:$0xff]
    %v83 = vld [vmem:[#allocation4 + $0x70] sm:$0xff]
    %v84 = vld [vmem:[#allocation4 + $0x78] sm:$0xff]
    %v85 = vld [vmem:[#allocation4 + $0x80] sm:$0xff]
    %v86 = vld [vmem:[#allocation4 + $0x88] sm:$0xff]
    %v87 = vld [vmem:[#allocation4 + $0x191] sm:$0x1]
    %v88 = vperm.slane %v87, 0
    %89 = vmatpush.msra.mxu0 %v86
    %90 = vmatpush.msra.mxu0 %v85
    %91 = vmatpush.msra.mxu0 %v84
    %92 = vmatpush.msra.mxu0 %v83
    %93 = vmatpush.msra.mxu0 %v82
    %94 = vmatpush.msra.mxu0 %v81
    %95 = vmatpush.msra.mxu0 %v80
    %96 = vmatpush.msra.mxu0 %v79
    %97 = vmatpush.msra.mxu0 %v78
    %98 = vmatpush.msra.mxu0 %v77
    %99 = vmatpush.msra.mxu0 %v76
    %100 = vmatpush.msra.mxu0 %v75
    %101 = vmatpush.msra.mxu0 %v74
    %102 = vmatpush.msra.mxu0 %v73
    %103 = vmatpush.msra.mxu0 %v72
    %104 = vmatpush.msra.mxu0 %v71
    %105 = vmatmul.f32.gmra.mxu0 %v70
    %v106 = vpop.f32.mrf.mxu0
    %v107 = vadd.f32 %v88, %v106
    %108 = vdwg.mxu0
    %v109 = vmax.f32 %v107, 0.0
    %v110 = vld [vmem:[#allocation4 + $0x90] sm:$0xff]
    %v111 = vld [vmem:[#allocation4 + $0x98] sm:$0xff]
    %v112 = vld [vmem:[#allocation4 + $0xa0] sm:$0xff]
    %v113 = vld [vmem:[#allocation4 + $0xa8] sm:$0xff]
    %v114 = vld [vmem:[#allocation4 + $0xb0] sm:$0xff]
    %v115 = vld [vmem:[#allocation4 + $0xb8] sm:$0xff]
    %v116 = vld [vmem:[#allocation4 + $0xc0] sm:$0xff]
    %v117 = vld [vmem:[#allocation4 + $0xc8] sm:$0xff]
    %v118 = vld [vmem:[#allocation4 + $0xd0] sm:$0xff]
    %v119 = vld [vmem:[#allocation4 + $0xd8] sm:$0xff]
    %v120 = vld [vmem:[#allocation4 + $0xe0] sm:$0xff]
    %v121 = vld [vmem:[#allocation4 + $0xe8] sm:$0xff]
    %v122 = vld [vmem:[#allocation4 + $0xf0] sm:$0xff]
    %v123 = vld [vmem:[#allocation4 + $0xf8] sm:$0xff]
    %v124 = vld [vmem:[#allocation4 + $0x100] sm:$0xff]
    %v125 = vld [vmem:[#allocation4 + $0x108] sm:$0xff]
    %v126 = vld [vmem:[#allocation4 + $0x192] sm:$0x1]
    %v127 = vperm.slane %v126, 0
    %128 = vmatpush.msra.mxu0 %v125
    %129 = vmatpush.msra.mxu0 %v124
    %130 = vmatpush.msra.mxu0 %v123
    %131 = vmatpush.msra.mxu0 %v122
    %132 = vmatpush.msra.mxu0 %v121
    %133 = vmatpush.msra.mxu0 %v120
    %134 = vmatpush.msra.mxu0 %v119
    %135 = vmatpush.msra.mxu0 %v118
    %136 = vmatpush.msra.mxu0 %v117
    %137 = vmatpush.msra.mxu0 %v116
    %138 = vmatpush.msra.mxu0 %v115
    %139 = vmatpush.msra.mxu0 %v114
    %140 = vmatpush.msra.mxu0 %v113
    %141 = vmatpush.msra.mxu0 %v112
    %142 = vmatpush.msra.mxu0 %v111
    %143 = vmatpush.msra.mxu0 %v110
    %144 = vmatmul.f32.gmra.mxu0 %v109
    %v145 = vpop.f32.mrf.mxu0
    %v146 = vadd.f32 %v127, %v145
    %147 = vdwg.mxu0
    %v148 = vmax.f32 %v146, 0.0
    %v149 = vld [vmem:[#allocation4 + $0x110] sm:$0xff]
    %v150 = vld [vmem:[#allocation4 + $0x118] sm:$0xff]
    %v151 = vld [vmem:[#allocation4 + $0x120] sm:$0xff]
    %v152 = vld [vmem:[#allocation4 + $0x128] sm:$0xff]
    %v153 = vld [vmem:[#allocation4 + $0x130] sm:$0xff]
    %v154 = vld [vmem:[#allocation4 + $0x138] sm:$0xff]
    %v155 = vld [vmem:[#allocation4 + $0x140] sm:$0xff]
    %v156 = vld [vmem:[#allocation4 + $0x148] sm:$0xff]
    %v157 = vld [vmem:[#allocation4 + $0x150] sm:$0xff]
    %v158 = vld [vmem:[#allocation4 + $0x158] sm:$0xff]
    %v159 = vld [vmem:[#allocation4 + $0x160] sm:$0xff]
    %v160 = vld [vmem:[#allocation4 + $0x168] sm:$0xff]
    %v161 = vld [vmem:[#allocation4 + $0x170] sm:$0xff]
    %v162 = vld [vmem:[#allocation4 + $0x178] sm:$0xff]
    %v163 = vld [vmem:[#allocation4 + $0x180] sm:$0xff]
    %v164 = vld [vmem:[#allocation4 + $0x188] sm:$0xff]
    %v165 = vld [vmem:[#allocation4 + $0x193] sm:$0x1]
    %v166 = vperm.slane %v165, 0
    %167 = vmatpush.msra.mxu0 %v164
    %168 = vmatpush.msra.mxu0 %v163
    %169 = vmatpush.msra.mxu0 %v162
    %170 = vmatpush.msra.mxu0 %v161
    %171 = vmatpush.msra.mxu0 %v160
    %172 = vmatpush.msra.mxu0 %v159
    %173 = vmatpush.msra.mxu0 %v158
    %174 = vmatpush.msra.mxu0 %v157
    %175 = vmatpush.msra.mxu0 %v156
    %176 = vmatpush.msra.mxu0 %v155
    %177 = vmatpush.msra.mxu0 %v154
    %178 = vmatpush.msra.mxu0 %v153
    %179 = vmatpush.msra.mxu0 %v152
    %180 = vmatpush.msra.mxu0 %v151
    %181 = vmatpush.msra.mxu0 %v150
    %182 = vmatpush.msra.mxu0 %v149
    %183 = vmatmul.f32.gmra.mxu0 %v148
    %v184 = vpop.f32.mrf.mxu0
    %v185 = vadd.f32 %v166, %v184
    %186 = vdwg.mxu0
    %v187 = vlaneseq
    %v188 = vand.u32 %v187, 127
    %vm189 = vcmp.lt.s32.totalorder %v188, 4
    %v190 = vsel %vm189, %v185, 0.0
    %191 = vadd.xlane.f32.xlu0 %v190
    %v192 = vpop.xlane.xlu0 %191
    %v193 = vmul.f32 %v192, 0.25
    %vm194 = vcmp.eq.s32.totalorder %v188, 4
    %v195 = vsel %vm194, %v185, 0.0
    %196 = vadd.xlane.f32.xlu0 %v195
    %v197 = vpop.xlane.xlu0 %196
    %v198 = vadd.f32 %v185, %v197
    %v199 = vsub.f32 %v198, %v193
    %200 = vst [vmem:[%s2] sm:$0xff] %v199
    // Predicated region
    $region18: #{dueling_critic_forward.1} parent=1 // pred_check
      _
    $region19: #{dueling_critic_forward.1} parent=1 // pred_check_branch
      %202 = sbr.rel (0) target = $region21
    $region20: #{dueling_critic_forward.1} parent=1 // pred_region
      _
    $region21: #{dueling_critic_forward.1} parent=1 // pred_fallthru
      _
    // Predicated region
    $region22: #{dueling_critic_forward.1} parent=1 // pred_check
      _
    $region23: #{dueling_critic_forward.1} parent=1 // pred_check_branch
      %204 = sbr.rel (0) target = $region25
    $region24: #{dueling_critic_forward.1} parent=1 // pred_region
      _
    $region25: #{dueling_critic_forward.1} parent=1 // pred_fallthru
      _
    %205 = vsyncpa [#allocation3], 1
    %206 = vsyncpa [#allocation5], 1

</llo_original>
